<compile_context>
chip_gen: v7x
topology: tpu7x:2x2x1
jax: 0.10.0
libtpu: 0.0.40
codegen_flags: <defaults>
</compile_context>

<pallas_src>
import functools

import jax
import jax.numpy as jnp
from jax.experimental import pallas as pl
from jax.experimental.pallas import tpu as pltpu


# ---------------------------------------------------------------------------
# Kernel body
# ---------------------------------------------------------------------------
def _taskres_kernel(base_ref, res_ref, out_ref, *, alpha):
    # out = base + alpha * residual   (elementwise on the VPU; mem-bound)
    a = jnp.asarray(alpha, base_ref.dtype)
    out_ref[...] = base_ref[...] + a * res_ref[...]


# ---------------------------------------------------------------------------
# Tiling policy
# ---------------------------------------------------------------------------
_VMEM_BUDGET_BYTES = 16 * 1024 * 1024   # budget for the pipelined blocks only
_VMEM_LIMIT_BYTES = 32 * 1024 * 1024    # explicit scoped-VMEM limit
                                        #   v5e: 32 of 128 MiB physical (OK)
                                        #   v6e: equals the default (OK)
                                        #   v7x: 32 of 64 MiB per TC (OK)
_MIN_SPLIT_BYTES = 4 * 1024 * 1024      # above this, force >= 2 row blocks so
                                        # both v7x TensorCores participate
_FUSE_BELOW_BYTES = 1 * 1024 * 1024     # below this, let XLA fuse plain jnp


def _sublane_rows(dtype):
    # Sub-32-bit dtypes pack along sublanes: (8,128) f32, (16,128) bf16/f16,
    # (32,128) int8/fp8.
    return max(8, 32 // jnp.dtype(dtype).itemsize)


def _lane_dense_shape(n, d):
    """Return (rows, lanes, reshaped?) presenting a lane-dense (mult-of-128)
    last dim when feat_dim is not already a multiple of 128."""
    if d % 128 == 0:
        return n, d, False
    total = n * d
    if total % 128 != 0:
        # Cannot cheaply make lane-dense; keep (n, d).  Tail stores will be
        # masked (perf only, still correct).
        return n, d, False
    lanes = 128
    while total % (lanes * 2) == 0 and lanes * 2 <= 16384:
        lanes *= 2
    return total // lanes, lanes, True


def _choose_block_rows(n, d, dtype, max_block_rows=None):
    itemsize = jnp.dtype(dtype).itemsize
    sub = _sublane_rows(dtype)
    bytes_per_row = d * itemsize
    total_bytes = 3 * n * bytes_per_row  # 2 inputs + 1 output

    # Single-block collapse: one grid step => no pipelining benefit, so the
    # footprint is ~3 operands x 1 block.  Only collapse when the array is
    # also too small for splitting across v7x's two TensorCores to pay off.
    if (max_block_rows is None
            and 3 * n * bytes_per_row <= _VMEM_BUDGET_BYTES
            and total_bytes <= _MIN_SPLIT_BYTES):
        return n  # full-extent block: legal even if n % 8 != 0

    # Tiled path: 2 inputs + 1 output, double buffered -> 6x block footprint.
    fit_rows = _VMEM_BUDGET_BYTES // (6 * bytes_per_row)
    tr = max(sub, (fit_rows // sub) * sub)

    if max_block_rows is not None:
        tr = max(sub, min(tr, (int(max_block_rows) // sub) * sub))

    # v7x: keep at least 2 row blocks for multi-MB arrays so both TCs (and
    # both TCs' HBM/DMA paths) get work.  No-op on v5e/v6e (1 TC).
    if total_bytes > _MIN_SPLIT_BYTES and n > sub:
        half_rows = ((pl.cdiv(n, 2) + sub - 1) // sub) * sub
        tr = min(tr, half_rows)

    tr = min(tr, n)
    return tr


# ---------------------------------------------------------------------------
# Wrapper
# ---------------------------------------------------------------------------
def taskres_forward(base_text_features, text_feature_residuals,
                    residual_scale=1.0, *, donate=False,
                    max_block_rows=None, force_pallas=False):
    """Pallas implementation of TaskResLearner.forward().

    base_text_features / text_feature_residuals: (num_classes, feat_dim)
    residual_scale: Python float (fixed at module construction => compile-time
        constant here).
    donate: if True, alias base_text_features to the output
        (input_output_aliases={0: 0}); combine with jax.jit donate_argnums on
        the base argument to cut HBM traffic from 3x to 2x the array size.
    force_pallas: bypass the small-size jnp fallback (used by the demo/tests).
    """
    assert base_text_features.shape == text_feature_residuals.shape
    assert base_text_features.dtype == text_feature_residuals.dtype
    n, d = base_text_features.shape
    dtype = base_text_features.dtype
    itemsize = jnp.dtype(dtype).itemsize
    alpha = float(residual_scale)

    # For the typical prompt-tuning size (tens of KB) a standalone kernel's
    # launch overhead dominates; let XLA fuse the axpy into its consumer.
    if not force_pallas and 3 * n * d * itemsize < _FUSE_BELOW_BYTES:
        return base_text_features + jnp.asarray(alpha, dtype) * text_feature_residuals

    # Present a lane-dense (multiple-of-128) last dim when feat_dim is not
    # already one; for an elementwise op this is pure layout plumbing.
    rows, lanes, reshaped = _lane_dense_shape(n, d)
    base2d = base_text_features.reshape(rows, lanes) if reshaped else base_text_features
    res2d = text_feature_residuals.reshape(rows, lanes) if reshaped else text_feature_residuals

    tr = _choose_block_rows(rows, lanes, dtype, max_block_rows)
    grid = (pl.cdiv(rows, tr),)

    # Full feature dim per block (lane-dense, unmasked vst, one contiguous DMA
    # per row block); grid only over rows, marked "parallel" so v7x's second
    # TensorCore splits the row blocks.
    spec = pl.BlockSpec((tr, lanes), lambda i: (i, 0))

    kernel = functools.partial(_taskres_kernel, alpha=alpha)

    cost = pl.CostEstimate(
        flops=2 * n * d,
        transcendentals=0,
        bytes_accessed=(2 if donate else 3) * n * d * itemsize,
    )

    out2d = pl.pallas_call(
        kernel,
        out_shape=jax.ShapeDtypeStruct((rows, lanes), dtype),
        grid=grid,
        in_specs=[spec, spec],
        out_specs=spec,
        input_output_aliases=({0: 0} if donate else {}),
        compiler_params=pltpu.CompilerParams(
            dimension_semantics=("parallel",),
            vmem_limit_bytes=_VMEM_LIMIT_BYTES,
        ),
        cost_estimate=cost,
    )(base2d, res2d)

    return out2d.reshape(n, d) if reshaped else out2d


# ---------------------------------------------------------------------------
# Demo / self-test
# ---------------------------------------------------------------------------
if __name__ == "__main__":
    key = jax.random.PRNGKey(0)
    residual_scale = 0.5

    # CLIP-like feature dim; a class count that is NOT a multiple of 8 to
    # exercise full-extent / partial-block handling.
    num_classes, feat_dim = 37, 512
    k_base, k_res, k_base2, k_res2 = jax.random.split(key, 4)
    base = jax.random.normal(k_base, (num_classes, feat_dim), dtype=jnp.float32)
    # nn.Parameter(torch.zeros_like(...)) -> zeros at init; perturb so the
    # alpha*residual path is actually exercised.
    res = 0.01 * jax.random.normal(k_res, (num_classes, feat_dim), dtype=jnp.float32)
    ref = base + residual_scale * res

    # 1) Pallas path, single lane-dense block covering the whole array.
    out = taskres_forward(base, res, residual_scale, force_pallas=True)
    out = jax.block_until_ready(out)
    assert out.shape == (num_classes, feat_dim) and out.dtype == jnp.float32
    assert jnp.allclose(out, ref, atol=1e-6), "mismatch (single block)"

    # 2) Pallas path, forced row tiling with a partial last block.
    out_tiled = taskres_forward(base, res, residual_scale,
                                force_pallas=True, max_block_rows=16)
    out_tiled = jax.block_until_ready(out_tiled)
    assert jnp.allclose(out_tiled, ref, atol=1e-6), "mismatch (tiled)"

    # 3) Pallas path with feat_dim not a multiple of 128 -> lane-dense reshape.
    n2, d2 = 48, 96
    base_b = jax.random.normal(k_base2, (n2, d2), dtype=jnp.float32)
    res_b = 0.01 * jax.random.normal(k_res2, (n2, d2), dtype=jnp.float32)
    ref_b = base_b + residual_scale * res_b
    out_b = taskres_forward(base_b, res_b, residual_scale, force_pallas=True)
    out_b = jax.block_until_ready(out_b)
    assert jnp.allclose(out_b, ref_b, atol=1e-6), "mismatch (lane-dense reshape)"

    # 4) Donated path: alias base -> output (2x instead of 3x HBM traffic).
    donated_base = base + 0.0  # fresh buffer so `base` stays usable
    donated_fn = jax.jit(
        functools.partial(taskres_forward, residual_scale=residual_scale,
                          donate=True, force_pallas=True),
        donate_argnums=(0,),
    )
    out_donated = jax.block_until_ready(donated_fn(donated_base, res))
    assert jnp.allclose(out_donated, ref, atol=1e-6), "mismatch (donated)"

    # 5) Default dispatch for tiny inputs falls back to fusable jnp.
    out_fused = jax.block_until_ready(taskres_forward(base, res, residual_scale))
    assert jnp.allclose(out_fused, ref, atol=1e-6), "mismatch (jnp fallback)"

    print("KERNEL_OK")
</pallas_src>

<mosaic_0001>
module attributes {stable_mosaic.version = 11 : i64} {
  func.func @_taskres_kernel(%arg0: i32, %arg1: memref<37x512xf32, #tpu.memory_space<vmem>>, %arg2: memref<37x512xf32, #tpu.memory_space<vmem>>, %arg3: memref<37x512xf32, #tpu.memory_space<vmem>>) attributes {dimension_semantics = [#tpu.dimension_semantics<parallel>], iteration_bounds = array<i64: 1>, scalar_prefetch = 0 : i64, scratch_operands = 0 : i64, tpu.core_type = #tpu.core_type<tc>, window_params = [{transform_indices = @transform_0, window_bounds = array<i64: 37, 512>}, {transform_indices = @transform_1, window_bounds = array<i64: 37, 512>}, {transform_indices = @transform_2, window_bounds = array<i64: 37, 512>}]} {
    %c0 = arith.constant 0 : index
    %c0_0 = arith.constant 0 : index
    %0 = vector.load %arg1[%c0, %c0_0] : memref<37x512xf32, #tpu.memory_space<vmem>>, vector<37x512xf32>
    %c0_1 = arith.constant 0 : index
    %c0_2 = arith.constant 0 : index
    %1 = vector.load %arg2[%c0_1, %c0_2] : memref<37x512xf32, #tpu.memory_space<vmem>>, vector<37x512xf32>
    %cst = arith.constant 5.000000e-01 : f32
    %2 = vector.broadcast %cst : f32 to vector<37x512xf32>
    %3 = arith.mulf %2, %1 : vector<37x512xf32>
    %4 = arith.addf %0, %3 : vector<37x512xf32>
    %c0_3 = arith.constant 0 : index
    %c0_4 = arith.constant 0 : index
    %5 = vector.load %arg3[%c0_3, %c0_4] : memref<37x512xf32, #tpu.memory_space<vmem>>, vector<37x512xf32>
    tpu.vector_store %arg3[%c0_3, %c0_4], %4 {strides = array<i32>} : memref<37x512xf32, #tpu.memory_space<vmem>>, vector<37x512xf32>,
    return
  }
  func.func @transform_0(%arg0: i32) -> (i32, i32) {
    %c0_i32 = arith.constant 0 : i32
    %c0_i32_0 = arith.constant 0 : i32
    return %arg0, %c0_i32 : i32, i32
  }
  func.func @transform_1(%arg0: i32) -> (i32, i32) {
    %c0_i32 = arith.constant 0 : i32
    %c0_i32_0 = arith.constant 0 : i32
    return %arg0, %c0_i32 : i32, i32
  }
  func.func @transform_2(%arg0: i32) -> (i32, i32) {
    %c0_i32 = arith.constant 0 : i32
    %c0_i32_0 = arith.constant 0 : i32
    return %arg0, %c0_i32 : i32, i32
  }
}

</mosaic_0001>

<llo_original>
// kernel: tpu_custom_call.1
$region0: #{tpu_custom_call.1}
  #allocation0 [shape = 'u32[]', space=smem, size = 0x4, offset = 0x4, fixed_abs, tag = 'smem constant byte address 0x4 - core index']
  #allocation1 [shape = 'u32[144,128]{1,0:T(1,128)}', space=vmem, size = 0x12000, scoped, tag = 'internal scratch']
  %s0 = inlined_call_operand.hbm [shape: f32[37,512], index: 0, kind: input, shape index: {}]
  %s1 = inlined_call_operand.hbm [shape: f32[37,512], index: 1, kind: input, shape index: {}]
  %s2 = inlined_call_operand.hbm [shape: f32[37,512], index: 2, kind: output, shape index: {}]
  %s3 = sld [smem:[#allocation0]]
  $region26: #{tpu_custom_call.1} parent=0
    _
  %s5 = ssub.s32 1, %s3
  %s6 = scalar_select 0, %s5, %s3
  $region1: #{tpu_custom_call.1} parent=0
    #allocation2 [shape = 'u8[81920]{0}', space=vmem, size = 0x14000, scoped, tag = 'input window, operand 0, single buffered']
    #allocation3 [shape = 's32[1]{0}', space=sflag, size = 0x4, scoped, tag = 'scoped memory for tpu_custom_call.1']
    #allocation4 [shape = 's32[1]{0}', space=sflag, size = 0x4, scoped, tag = 'scoped memory for tpu_custom_call.1']
    #allocation5 [shape = 'u8[81920]{0}', space=vmem, size = 0x14000, scoped, tag = 'input window, operand 1, single buffered']
    #allocation6 [shape = 's32[1]{0}', space=sflag, size = 0x4, scoped, tag = 'scoped memory for tpu_custom_call.1']
    #allocation7 [shape = 'u8[81920]{0}', space=vmem, size = 0x14000, scoped, tag = 'output window, operand 0, single buffered']
    %7 = vsyncpa [#allocation3], 0
    %8 = vsyncpa [#allocation6], 0
    %9 = vsyncpa [#allocation4], 0
    // Predicated region
    $region2: #{tpu_custom_call.1} parent=1 // pred_check
      _
    $region3: #{tpu_custom_call.1} parent=1 // pred_check_branch
      %11 = sbr.rel (0) target = $region5
    $region4: #{tpu_custom_call.1} parent=1 // pred_region
      %s13 = ssub.s32 2560, 2560
      %14 = vsyncadd [#allocation3], %s13
      %s15 = sshll.u32 [#allocation2], 4
      %s16 = int_to_ptr.vmem [resolvable:$true] %s15
      %21 = dma.hbm_to_vmem [thread:$0]  %s0, 2560, %s16, [#allocation3], 512, 512, 32
    $region5: #{tpu_custom_call.1} parent=1 // pred_fallthru
      _
    // Predicated region
    $region6: #{tpu_custom_call.1} parent=1 // pred_check
      _
    $region7: #{tpu_custom_call.1} parent=1 // pred_check_branch
      %23 = sbr.rel (0) target = $region9
    $region8: #{tpu_custom_call.1} parent=1 // pred_region
      %s25 = ssub.s32 2560, 2560
      %26 = vsyncadd [#allocation6], %s25
      %s27 = sshll.u32 [#allocation5], 4
      %s28 = int_to_ptr.vmem [resolvable:$true] %s27
      %33 = dma.hbm_to_vmem [thread:$0]  %s1, 2560, %s28, [#allocation6], 512, 512, 32
    $region9: #{tpu_custom_call.1} parent=1 // pred_fallthru
      _
    // Predicated region
    $region10: #{tpu_custom_call.1} parent=1 // pred_check
      _
    $region11: #{tpu_custom_call.1} parent=1 // pred_check_branch
      %35 = sbr.rel (0) target = $region13
    $region12: #{tpu_custom_call.1} parent=1 // pred_region
      %36 = dma.done [#allocation3], 2560
    $region13: #{tpu_custom_call.1} parent=1 // pred_fallthru
      _
    // Predicated region
    $region14: #{tpu_custom_call.1} parent=1 // pred_check
      _
    $region15: #{tpu_custom_call.1} parent=1 // pred_check_branch
      %38 = sbr.rel (0) target = $region17
    $region16: #{tpu_custom_call.1} parent=1 // pred_region
      %39 = dma.done [#allocation6], 2560
    $region17: #{tpu_custom_call.1} parent=1 // pred_fallthru
      _
    %v40 = vld [vmem:[#allocation2] sm:$0xff]
    %v41 = vld [vmem:[#allocation2 + $0x8] sm:$0xff]
    %v42 = vld [vmem:[#allocation2 + $0x10] sm:$0xff]
    %v43 = vld [vmem:[#allocation2 + $0x18] sm:$0xff]
    %v44 = vld [vmem:[#allocation2 + $0x20] sm:$0xff]
    %v45 = vld [vmem:[#allocation2 + $0x28] sm:$0xff]
    %v46 = vld [vmem:[#allocation2 + $0x30] sm:$0xff]
    %v47 = vld [vmem:[#allocation2 + $0x38] sm:$0xff]
    %v48 = vld [vmem:[#allocation2 + $0x40] sm:$0xff]
    %v49 = vld [vmem:[#allocation2 + $0x48] sm:$0xff]
    %v50 = vld [vmem:[#allocation2 + $0x50] sm:$0xff]
    %v51 = vld [vmem:[#allocation2 + $0x58] sm:$0xff]
    %v52 = vld [vmem:[#allocation2 + $0x60] sm:$0xff]
    %v53 = vld [vmem:[#allocation2 + $0x68] sm:$0xff]
    %v54 = vld [vmem:[#allocation2 + $0x70] sm:$0xff]
    %v55 = vld [vmem:[#allocation2 + $0x78] sm:$0xff]
    %v56 = vld [vmem:[#allocation2 + $0x80] sm:$0x1f]
    %v57 = vld [vmem:[#allocation2 + $0x88] sm:$0x1f]
    %v58 = vld [vmem:[#allocation2 + $0x90] sm:$0x1f]
    %v59 = vld [vmem:[#allocation2 + $0x98] sm:$0x1f]
    %v60 = vld [vmem:[#allocation5] sm:$0xff]
    %v61 = vld [vmem:[#allocation5 + $0x8] sm:$0xff]
    %v62 = vld [vmem:[#allocation5 + $0x10] sm:$0xff]
    %v63 = vld [vmem:[#allocation5 + $0x18] sm:$0xff]
    %v64 = vld [vmem:[#allocation5 + $0x20] sm:$0xff]
    %v65 = vld [vmem:[#allocation5 + $0x28] sm:$0xff]
    %v66 = vld [vmem:[#allocation5 + $0x30] sm:$0xff]
    %v67 = vld [vmem:[#allocation5 + $0x38] sm:$0xff]
    %v68 = vld [vmem:[#allocation5 + $0x40] sm:$0xff]
    %v69 = vld [vmem:[#allocation5 + $0x48] sm:$0xff]
    %v70 = vld [vmem:[#allocation5 + $0x50] sm:$0xff]
    %v71 = vld [vmem:[#allocation5 + $0x58] sm:$0xff]
    %v72 = vld [vmem:[#allocation5 + $0x60] sm:$0xff]
    %v73 = vld [vmem:[#allocation5 + $0x68] sm:$0xff]
    %v74 = vld [vmem:[#allocation5 + $0x70] sm:$0xff]
    %v75 = vld [vmem:[#allocation5 + $0x78] sm:$0xff]
    %v76 = vld [vmem:[#allocation5 + $0x80] sm:$0x1f]
    %v77 = vld [vmem:[#allocation5 + $0x88] sm:$0x1f]
    %v78 = vld [vmem:[#allocation5 + $0x90] sm:$0x1f]
    %v79 = vld [vmem:[#allocation5 + $0x98] sm:$0x1f]
    %v80 = vmul.f32 %v60, 0.5
    %v81 = vmul.f32 %v61, 0.5
    %v82 = vmul.f32 %v62, 0.5
    %v83 = vmul.f32 %v63, 0.5
    %v84 = vmul.f32 %v64, 0.5
    %v85 = vmul.f32 %v65, 0.5
    %v86 = vmul.f32 %v66, 0.5
    %v87 = vmul.f32 %v67, 0.5
    %v88 = vmul.f32 %v68, 0.5
    %v89 = vmul.f32 %v69, 0.5
    %v90 = vmul.f32 %v70, 0.5
    %v91 = vmul.f32 %v71, 0.5
    %v92 = vmul.f32 %v72, 0.5
    %v93 = vmul.f32 %v73, 0.5
    %v94 = vmul.f32 %v74, 0.5
    %v95 = vmul.f32 %v75, 0.5
    %v96 = vmul.f32 %v76, 0.5
    %v97 = vmul.f32 %v77, 0.5
    %v98 = vmul.f32 %v78, 0.5
    %v99 = vmul.f32 %v79, 0.5
    %v100 = vadd.f32 %v40, %v80
    %v101 = vadd.f32 %v41, %v81
    %v102 = vadd.f32 %v42, %v82
    %v103 = vadd.f32 %v43, %v83
    %v104 = vadd.f32 %v44, %v84
    %v105 = vadd.f32 %v45, %v85
    %v106 = vadd.f32 %v46, %v86
    %v107 = vadd.f32 %v47, %v87
    %v108 = vadd.f32 %v48, %v88
    %v109 = vadd.f32 %v49, %v89
    %v110 = vadd.f32 %v50, %v90
    %v111 = vadd.f32 %v51, %v91
    %v112 = vadd.f32 %v52, %v92
    %v113 = vadd.f32 %v53, %v93
    %v114 = vadd.f32 %v54, %v94
    %v115 = vadd.f32 %v55, %v95
    %v116 = vadd.f32 %v56, %v96
    %v117 = vadd.f32 %v57, %v97
    %v118 = vadd.f32 %v58, %v98
    %v119 = vadd.f32 %v59, %v99
    %120 = vst [vmem:[#allocation7] sm:$0xff] %v100
    %121 = vst [vmem:[#allocation7 + $0x8] sm:$0xff] %v101
    %122 = vst [vmem:[#allocation7 + $0x10] sm:$0xff] %v102
    %123 = vst [vmem:[#allocation7 + $0x18] sm:$0xff] %v103
    %124 = vst [vmem:[#allocation7 + $0x20] sm:$0xff] %v104
    %125 = vst [vmem:[#allocation7 + $0x28] sm:$0xff] %v105
    %126 = vst [vmem:[#allocation7 + $0x30] sm:$0xff] %v106
    %127 = vst [vmem:[#allocation7 + $0x38] sm:$0xff] %v107
    %128 = vst [vmem:[#allocation7 + $0x40] sm:$0xff] %v108
    %129 = vst [vmem:[#allocation7 + $0x48] sm:$0xff] %v109
    %130 = vst [vmem:[#allocation7 + $0x50] sm:$0xff] %v110
    %131 = vst [vmem:[#allocation7 + $0x58] sm:$0xff] %v111
    %132 = vst [vmem:[#allocation7 + $0x60] sm:$0xff] %v112
    %133 = vst [vmem:[#allocation7 + $0x68] sm:$0xff] %v113
    %134 = vst [vmem:[#allocation7 + $0x70] sm:$0xff] %v114
    %135 = vst [vmem:[#allocation7 + $0x78] sm:$0xff] %v115
    %136 = vst [vmem:[#allocation7 + $0x80] sm:$0x1f] %v116
    %137 = vst [vmem:[#allocation7 + $0x88] sm:$0x1f] %v117
    %138 = vst [vmem:[#allocation7 + $0x90] sm:$0x1f] %v118
    %139 = vst [vmem:[#allocation7 + $0x98] sm:$0x1f] %v119
    // Predicated region
    $region18: #{tpu_custom_call.1} parent=1 // pred_check
      _
    $region19: #{tpu_custom_call.1} parent=1 // pred_check_branch
      %141 = sbr.rel (0) target = $region21
    $region20: #{tpu_custom_call.1} parent=1 // pred_region
      %s143 = ssub.s32 2560, 2560
      %144 = vsyncadd [#allocation4], %s143
      %s145 = sshll.u32 [#allocation7], 4
      %s146 = int_to_ptr.vmem [resolvable:$true] %s145
      %151 = dma.vmem_to_hbm [thread:$0]  %s146, 2560, %s2, [#allocation4], 512, 512, 32
    $region21: #{tpu_custom_call.1} parent=1 // pred_fallthru
      _
    // Predicated region
    $region22: #{tpu_custom_call.1} parent=1 // pred_check
      _
    $region23: #{tpu_custom_call.1} parent=1 // pred_check_branch
      %153 = sbr.rel (0) target = $region25
    $region24: #{tpu_custom_call.1} parent=1 // pred_region
      %154 = dma.done [#allocation4], 2560
    $region25: #{tpu_custom_call.1} parent=1 // pred_fallthru
      _
    %155 = vsyncpa [#allocation3], 1
    %156 = vsyncpa [#allocation6], 1
    %157 = vsyncpa [#allocation4], 1

</llo_original>
